<compile_context>
chip_gen: v7x
topology: tpu7x:2x2x1
jax: 0.10.0
libtpu: 0.0.40
codegen_flags: <defaults>
</compile_context>

<pallas_src>
import jax
import jax.numpy as jnp
import numpy as np
from jax import lax
from jax.experimental import pallas as pl
from jax.experimental.pallas import tpu as pltpu


# ----------------------------------------------------------------------------
# Kernel helpers
# ----------------------------------------------------------------------------
def _elu_f32(v):
    # ELU negative branch.  jax.nn.elu / PyTorch use expm1; to avoid relying on
    # an expm1 lowering in Mosaic we emulate it: exp(v)-1 away from zero and a
    # cubic Taylor series near zero (rel. error < 2e-6), which removes the
    # catastrophic cancellation of exp(v)-1 at small |v| flagged in review.
    vn = jnp.minimum(v, 0.0)
    em1 = jnp.where(vn > -0.03125,
                    vn * (1.0 + vn * (0.5 + vn * (1.0 / 6.0))),
                    jnp.exp(vn) - 1.0)                     # exp -> EUP slot
    return jnp.where(v > 0, v, em1)


# ----------------------------------------------------------------------------
# Pallas kernel: one batch chunk per grid step; matmul + ELU + slice-add pools.
# ----------------------------------------------------------------------------
def _eegnet_kernel(xcol_ref, wfused_ref, bias1_ref, wpoint_ref, bias2_ref, o_ref):
    # xcol_ref : (hs*Cp, 32*w2*NB) bf16  im2col slab, columns ordered (r,s,n,q)
    # wfused   : (F1*D, hs*Cp)     bf16  temporal∘spatial conv, BN1/BN2 folded
    # bias1    : (F1*D, 1)         f32   effective bias (BN1 pushed through + BN2)
    # wpoint   : (F2, F1*D)        bf16  pointwise 1x1, BN3 scale folded
    # bias2    : (F2, 1)           f32   BN3 bias
    # o_ref    : (F2, NB*w2)       f32   lane-stacked output, lane index = n*w2+q
    lanes = xcol_ref.shape[1]
    q1 = lanes // 4          # lanes after AvgPool(1,4)  == 8*w2*NB
    q2 = q1 // 8             # lanes after AvgPool(1,8)  ==   w2*NB

    # Fused conv_temporal + conv_spatial (+ folded BN1/BN2): one MXU matmul,
    # bf16 operands, f32 accumulation.  Bias stays a VPU add: folding it into
    # the matmul would grow the contraction dim to hs*Cp+1 (breaking 8-sublane
    # alignment) and the VPU is not the binding unit at these shapes.
    z = jnp.dot(wfused_ref[...], xcol_ref[...],
                preferred_element_type=jnp.float32) + bias1_ref[...]
    z = _elu_f32(z)

    # average_pool_2d_1 (1, 4): pool1 phase r is the outermost lane block, so
    # the window mean is 4 contiguous, aligned, unit-stride slice adds (VPU).
    zp = 0.25 * (z[:, 0 * q1:1 * q1] + z[:, 1 * q1:2 * q1]
                 + z[:, 2 * q1:3 * q1] + z[:, 3 * q1:4 * q1])

    # dropout: identity in eval mode.

    # conv_separable_point (1x1) with BN3 scale folded in, + BN3 bias.
    u = jnp.dot(wpoint_ref[...], zp.astype(wpoint_ref.dtype),
                preferred_element_type=jnp.float32) + bias2_ref[...]
    u = _elu_f32(u)

    # average_pool_2d_2 (1, 8): pool2 phase s is the next lane block.
    acc = u[:, 0:q2]
    for s in range(1, 8):
        acc = acc + u[:, s * q2:(s + 1) * q2]
    o_ref[...] = (0.125 * acc).astype(o_ref.dtype)


# ----------------------------------------------------------------------------
# Wrapper: host-side folding / im2col layout plumbing / BlockSpecs / grid.
# ----------------------------------------------------------------------------
def eegnet_forward(x_nchw, folded_params, *, hs, pad, nb=None,
                   vmem_budget_bytes=12 << 20):
    """Eval-mode EEGNet forward.  x_nchw: (N, 1, C, T) f32 -> (N, F2, 1, w2)."""
    w_kc, b2_eff, wpf, b3 = folded_params
    n, one, c, t = x_nchw.shape
    assert one == 1
    f1d = w_kc.shape[0]
    f2 = wpf.shape[0]

    wp_w = t + 2 * pad                  # padded time length
    w_out = wp_w - hs + 1               # temporal-conv output width
    w2 = (w_out // 4) // 8              # width after both (truncating) AvgPools
    assert w2 >= 1, "time dimension too small for the pooling stack"
    lpe = 32 * w2                       # conv columns the pools consume, per element

    cp = -(-c // 8) * 8                 # EEG channels padded to a sublane multiple

    # ---- batch chunk size NB (review: lane-dense output & >=512-lane matmuls,
    # capped by an explicit per-step VMEM working-set budget) ------------------
    if nb is None:
        nb = max(pl.cdiv(512, lpe), pl.cdiv(128, w2))
    per_elem = (2 * (hs * cp) * lpe * 2          # xcol, double-buffered, bf16
                + 2 * f2 * w2 * 4                # output, double-buffered, f32
                + 3 * f1d * lpe * 4              # z / ELU temporaries, f32
                + 3 * f2 * (lpe // 4) * 4)       # zp / u temporaries, f32
    nb = int(max(1, min(nb, n, vmem_budget_bytes // max(per_elem, 1))))
    nchunks = int(pl.cdiv(n, nb))
    n_padded = nchunks * nb

    # ---- host-side im2col (layout plumbing only) -----------------------------
    # Column order (r, s, n, q) with conv-time t = (q*8 + s)*4 + r, so both
    # AvgPools reduce over contiguous lane blocks inside the kernel.  Built per
    # batch element -> no cross-element contamination, no masking needed.
    x3 = jnp.pad(x_nchw[:, 0], ((0, n_padded - n), (0, cp - c), (pad, pad)))   # (Np, Cp, Wp)
    cols = jnp.stack([x3[:, :, k:k + lpe] for k in range(hs)], axis=1)         # (Np, hs, Cp, lpe)
    xcol = (cols.reshape(nchunks, nb, hs, cp, w2, 8, 4)    # (ch, n, k, c, q, s, r)
                .transpose(0, 2, 3, 6, 5, 1, 4)            # (ch, k, c, r, s, n, q)
                .reshape(nchunks, hs * cp, 32 * w2 * nb)
                .astype(jnp.bfloat16))                     # bf16 operand for the MXU

    # ---- weights: pad channel dim, flatten (k, c) -> k*Cp + c, bf16 ----------
    w1mat = (jnp.pad(w_kc, ((0, 0), (0, 0), (0, cp - c)))
                .reshape(f1d, hs * cp).astype(jnp.bfloat16))
    wpoint = wpf.astype(jnp.bfloat16)
    bias1 = b2_eff.reshape(f1d, 1).astype(jnp.float32)
    bias2 = b3.reshape(f2, 1).astype(jnp.float32)

    out = pl.pallas_call(
        _eegnet_kernel,
        grid=(nchunks,),
        in_specs=[
            pl.BlockSpec((None, hs * cp, lpe * nb), lambda i: (i, 0, 0)),  # im2col chunk
            pl.BlockSpec((f1d, hs * cp), lambda i: (0, 0)),                # fused conv weight
            pl.BlockSpec((f1d, 1), lambda i: (0, 0)),                      # fused bias
            pl.BlockSpec((f2, f1d), lambda i: (0, 0)),                     # pointwise weight
            pl.BlockSpec((f2, 1), lambda i: (0, 0)),                       # BN3 bias
        ],
        out_specs=pl.BlockSpec((None, f2, nb * w2), lambda i: (i, 0, 0)),
        out_shape=jax.ShapeDtypeStruct((nchunks, f2, nb * w2), jnp.float32),
        compiler_params=pltpu.CompilerParams(
            # Megacore sharding only pays off once the grid has many
            # substantial steps (review, v7x); a tiny grid stays "arbitrary".
            dimension_semantics=("parallel",) if nchunks > 1 else ("arbitrary",),
            # Explicit VMEM limit: >= working set + headroom, and <= half of
            # v7x's 64 MiB physical VMEM (v5e/v6e have 128 MiB physical).
            vmem_limit_bytes=32 * 1024 * 1024),
    )(xcol, w1mat, bias1, wpoint, bias2)

    # ---- un-stack batch from the lane axis, back to NCHW ---------------------
    out = (out.reshape(nchunks, f2, nb, w2)
               .transpose(0, 2, 1, 3)
               .reshape(n_padded, f2, w2)[:n]
               .reshape(n, f2, 1, w2))
    return out


# ----------------------------------------------------------------------------
# Deterministic raw (PyTorch-shaped) parameters + host-side BN folding.
# ----------------------------------------------------------------------------
def init_raw_params(key, f1, f2, d, ch, hs):
    ks = jax.random.split(key, 6)
    wt4 = 0.1 * jax.random.normal(ks[0], (f1, 1, 1, hs), jnp.float32)      # conv_temporal
    ws4 = 0.1 * jax.random.normal(ks[1], (f1 * d, 1, ch, 1), jnp.float32)  # conv_spatial (grouped)
    wp4 = 0.1 * jax.random.normal(ks[2], (f2, f1 * d, 1, 1), jnp.float32)  # pointwise

    def bn_raw(k, nchan):
        kg, kb, km, kv = jax.random.split(k, 4)
        gamma = 1.0 + 0.1 * jax.random.normal(kg, (nchan,), jnp.float32)
        beta = 0.1 * jax.random.normal(kb, (nchan,), jnp.float32)
        mean = 0.1 * jax.random.normal(km, (nchan,), jnp.float32)
        var = jax.random.uniform(kv, (nchan,), jnp.float32, minval=0.5, maxval=1.5)
        return gamma, beta, mean, var

    return (wt4, bn_raw(ks[3], f1), ws4, bn_raw(ks[4], f1 * d), wp4, bn_raw(ks[5], f2))


def fold_params(raw, *, d, eps=1e-5):
    """Fold BN1/BN2/BN3 into the conv weights (eval mode)."""
    wt4, bn1, ws4, bn2, wp4, bn3 = raw
    f1d = ws4.shape[0]

    def bn_fold(gamma, beta, mean, var):
        s = gamma / jnp.sqrt(var + eps)
        return s, beta - mean * s

    s1, b1 = bn_fold(*bn1)
    s2, b2 = bn_fold(*bn2)
    s3, b3 = bn_fold(*bn3)

    wt = wt4[:, 0, 0, :]        # (F1, hs)     temporal filters
    wsd = ws4[:, 0, :, 0]       # (F1*D, C)    depthwise spatial filters
    wpm = wp4[:, :, 0, 0]       # (F2, F1*D)   pointwise

    g = jnp.arange(f1d) // d    # output channel -> its depthwise group (F1 index)
    # Fused temporal∘spatial weight with BN1/BN2 scales folded in:
    #   w_kc[o, k, c] = s2[o] * s1[g(o)] * wt[g(o), k] * wsd[o, c]
    w_kc = (s2 * s1[g])[:, None, None] * wt[g][:, :, None] * wsd[:, None, :]
    # BN1 bias pushed through the linear depthwise conv, plus BN2 bias:
    b2_eff = b2 + s2 * b1[g] * wsd.sum(axis=1)
    # BN3 scale folded into the pointwise conv; BN3 bias kept.
    wpf = wpm * s3[:, None]
    return w_kc, b2_eff, wpf, b3


# ----------------------------------------------------------------------------
# Pure-JAX reference (XLA convs) for correctness validation.
# ----------------------------------------------------------------------------
def reference_forward(x, raw, *, f1, pad):
    wt4, bn1, ws4, bn2, wp4, bn3 = raw
    dn = ('NCHW', 'OIHW', 'NCHW')

    def bn_apply(v, gamma, beta, mean, var):
        s = gamma / jnp.sqrt(var + 1e-5)
        return v * s[None, :, None, None] + (beta - mean * s)[None, :, None, None]

    def avgpool_w(v, k):
        nn_, cc, hh, ww = v.shape
        wk = (ww // k) * k
        return v[..., :wk].reshape(nn_, cc, hh, ww // k, k).mean(-1)

    y = lax.conv_general_dilated(x, wt4, (1, 1), ((0, 0), (pad, pad)), dimension_numbers=dn)
    y = bn_apply(y, *bn1)
    y = lax.conv_general_dilated(y, ws4, (1, 1), ((0, 0), (0, 0)), dimension_numbers=dn,
                                 feature_group_count=f1)
    y = bn_apply(y, *bn2)
    y = jax.nn.elu(y)
    y = avgpool_w(y, 4)
    y = lax.conv_general_dilated(y, wp4, (1, 1), ((0, 0), (0, 0)), dimension_numbers=dn)
    y = bn_apply(y, *bn3)
    y = jax.nn.elu(y)
    y = avgpool_w(y, 8)
    return y


if __name__ == "__main__":
    # EEGNet hyperparameters (small): f1=4, f2=8, d=2, channel_size=4,
    # dropout=0.25 (identity in eval), sampling_rate=8 -> temporal kernel 4.
    F1, F2, D, CH, SR = 4, 8, 2, 4, 8
    HS = SR // 2          # half sampling rate = temporal kernel width (4)
    PAD = HS // 2         # temporal padding (2)
    N, T = 8, 64          # batch, time samples

    key = jax.random.PRNGKey(0)
    kx, kp = jax.random.split(key)
    x = jax.random.normal(kx, (N, 1, CH, T), jnp.float32)   # NCHW input

    raw = init_raw_params(kp, F1, F2, D, CH, HS)
    folded = fold_params(raw, d=D)

    out = eegnet_forward(x, folded, hs=HS, pad=PAD)   # whole batch in one grid step
    out = jax.block_until_ready(out)

    ref = reference_forward(x, raw, f1=F1, pad=PAD)
    assert out.shape == ref.shape, (out.shape, ref.shape)
    # bf16 MXU operands -> tolerance sized for bf16 input quantization.
    np.testing.assert_allclose(np.asarray(out), np.asarray(ref), atol=2e-2, rtol=2e-2)

    print("KERNEL_OK")
</pallas_src>

<mosaic_0001>
module attributes {stable_mosaic.version = 11 : i64} {
  func.func @_eegnet_kernel(%arg0: i32, %arg1: memref<1x32x512xbf16, #tpu.memory_space<vmem>>, %arg2: memref<8x32xbf16, #tpu.memory_space<vmem>>, %arg3: memref<8x1xf32, #tpu.memory_space<vmem>>, %arg4: memref<8x8xbf16, #tpu.memory_space<vmem>>, %arg5: memref<8x1xf32, #tpu.memory_space<vmem>>, %arg6: memref<1x8x16xf32, #tpu.memory_space<vmem>>) attributes {dimension_semantics = [#tpu.dimension_semantics<arbitrary>], iteration_bounds = array<i64: 1>, scalar_prefetch = 0 : i64, scratch_operands = 0 : i64, tpu.core_type = #tpu.core_type<tc>, window_params = [{transform_indices = @transform_0, window_bounds = array<i64: 1, 32, 512>}, {pipeline_mode = #tpu.pipeline_mode<synchronous>, transform_indices = @transform_1, window_bounds = array<i64: 8, 32>}, {pipeline_mode = #tpu.pipeline_mode<synchronous>, transform_indices = @transform_2, window_bounds = array<i64: 8, 1>}, {pipeline_mode = #tpu.pipeline_mode<synchronous>, transform_indices = @transform_3, window_bounds = array<i64: 8, 8>}, {pipeline_mode = #tpu.pipeline_mode<synchronous>, transform_indices = @transform_4, window_bounds = array<i64: 8, 1>}, {transform_indices = @transform_5, window_bounds = array<i64: 1, 8, 16>}]} {
    %c0 = arith.constant 0 : index
    %c0_0 = arith.constant 0 : index
    %0 = vector.load %arg2[%c0, %c0_0] : memref<8x32xbf16, #tpu.memory_space<vmem>>, vector<8x32xbf16>
    %c0_1 = arith.constant 0 : index
    %c0_2 = arith.constant 0 : index
    %c0_3 = arith.constant 0 : index
    %1 = vector.load %arg1[%c0_1, %c0_2, %c0_3] : memref<1x32x512xbf16, #tpu.memory_space<vmem>>, vector<1x32x512xbf16>
    %2 = vector.shape_cast %1 : vector<1x32x512xbf16> to vector<32x512xbf16>
    %cst = arith.constant dense<0.000000e+00> : vector<8x512xf32>
    %3 = tpu.matmul %0, %2, %cst {dimension_numbers = #tpu.dot_dimension_numbers<[1], [0], [0], [1], [0, 0, 1, 1], [], []>} : vector<8x32xbf16>, vector<32x512xbf16>, vector<8x512xf32> -> vector<8x512xf32>
    %c0_4 = arith.constant 0 : index
    %c0_5 = arith.constant 0 : index
    %4 = vector.load %arg3[%c0_4, %c0_5] : memref<8x1xf32, #tpu.memory_space<vmem>>, vector<8x1xf32>
    %5 = vector.broadcast %4 : vector<8x1xf32> to vector<8x512xf32>
    %6 = arith.addf %3, %5 : vector<8x512xf32>
    %cst_6 = arith.constant 0.000000e+00 : f32
    %7 = vector.broadcast %cst_6 : f32 to vector<8x512xf32>
    %8 = arith.minimumf %6, %7 : vector<8x512xf32>
    %cst_7 = arith.constant -3.125000e-02 : f32
    %9 = vector.broadcast %cst_7 : f32 to vector<8x512xf32>
    %10 = arith.cmpf ogt, %8, %9 : vector<8x512xf32>
    %cst_8 = arith.constant 0.166666672 : f32
    %11 = vector.broadcast %cst_8 : f32 to vector<8x512xf32>
    %12 = arith.mulf %8, %11 : vector<8x512xf32>
    %cst_9 = arith.constant 5.000000e-01 : f32
    %13 = vector.broadcast %cst_9 : f32 to vector<8x512xf32>
    %14 = arith.addf %13, %12 : vector<8x512xf32>
    %15 = arith.mulf %8, %14 : vector<8x512xf32>
    %cst_10 = arith.constant 1.000000e+00 : f32
    %16 = vector.broadcast %cst_10 : f32 to vector<8x512xf32>
    %17 = arith.addf %16, %15 : vector<8x512xf32>
    %18 = arith.mulf %8, %17 : vector<8x512xf32>
    %19 = math.exp %8 : vector<8x512xf32>
    %cst_11 = arith.constant 1.000000e+00 : f32
    %20 = vector.broadcast %cst_11 : f32 to vector<8x512xf32>
    %21 = arith.subf %19, %20 : vector<8x512xf32>
    %22 = arith.select %10, %18, %21 : vector<8x512xi1>, vector<8x512xf32>
    %cst_12 = arith.constant 0.000000e+00 : f32
    %23 = vector.broadcast %cst_12 : f32 to vector<8x512xf32>
    %24 = arith.cmpf ogt, %6, %23 : vector<8x512xf32>
    %25 = arith.select %24, %6, %22 : vector<8x512xi1>, vector<8x512xf32>
    %26 = vector.extract_strided_slice %25 {offsets = [0, 0], sizes = [8, 128], strides = [1, 1]} : vector<8x512xf32> to vector<8x128xf32>
    %27 = vector.extract_strided_slice %25 {offsets = [0, 128], sizes = [8, 128], strides = [1, 1]} : vector<8x512xf32> to vector<8x128xf32>
    %28 = arith.addf %26, %27 : vector<8x128xf32>
    %29 = vector.extract_strided_slice %25 {offsets = [0, 256], sizes = [8, 128], strides = [1, 1]} : vector<8x512xf32> to vector<8x128xf32>
    %30 = arith.addf %28, %29 : vector<8x128xf32>
    %31 = vector.extract_strided_slice %25 {offsets = [0, 384], sizes = [8, 128], strides = [1, 1]} : vector<8x512xf32> to vector<8x128xf32>
    %32 = arith.addf %30, %31 : vector<8x128xf32>
    %cst_13 = arith.constant 2.500000e-01 : f32
    %33 = vector.broadcast %cst_13 : f32 to vector<8x128xf32>
    %34 = arith.mulf %33, %32 : vector<8x128xf32>
    %c0_14 = arith.constant 0 : index
    %c0_15 = arith.constant 0 : index
    %35 = vector.load %arg4[%c0_14, %c0_15] : memref<8x8xbf16, #tpu.memory_space<vmem>>, vector<8x8xbf16>
    %36 = arith.truncf %34 : vector<8x128xf32> to vector<8x128xbf16>
    %cst_16 = arith.constant dense<0.000000e+00> : vector<8x128xf32>
    %37 = tpu.matmul %35, %36, %cst_16 {dimension_numbers = #tpu.dot_dimension_numbers<[1], [0], [0], [1], [0, 0, 1, 1], [], []>} : vector<8x8xbf16>, vector<8x128xbf16>, vector<8x128xf32> -> vector<8x128xf32>
    %c0_17 = arith.constant 0 : index
    %c0_18 = arith.constant 0 : index
    %38 = vector.load %arg5[%c0_17, %c0_18] : memref<8x1xf32, #tpu.memory_space<vmem>>, vector<8x1xf32>
    %39 = vector.broadcast %38 : vector<8x1xf32> to vector<8x128xf32>
    %40 = arith.addf %37, %39 : vector<8x128xf32>
    %cst_19 = arith.constant 0.000000e+00 : f32
    %41 = vector.broadcast %cst_19 : f32 to vector<8x128xf32>
    %42 = arith.minimumf %40, %41 : vector<8x128xf32>
    %cst_20 = arith.constant -3.125000e-02 : f32
    %43 = vector.broadcast %cst_20 : f32 to vector<8x128xf32>
    %44 = arith.cmpf ogt, %42, %43 : vector<8x128xf32>
    %cst_21 = arith.constant 0.166666672 : f32
    %45 = vector.broadcast %cst_21 : f32 to vector<8x128xf32>
    %46 = arith.mulf %42, %45 : vector<8x128xf32>
    %cst_22 = arith.constant 5.000000e-01 : f32
    %47 = vector.broadcast %cst_22 : f32 to vector<8x128xf32>
    %48 = arith.addf %47, %46 : vector<8x128xf32>
    %49 = arith.mulf %42, %48 : vector<8x128xf32>
    %cst_23 = arith.constant 1.000000e+00 : f32
    %50 = vector.broadcast %cst_23 : f32 to vector<8x128xf32>
    %51 = arith.addf %50, %49 : vector<8x128xf32>
    %52 = arith.mulf %42, %51 : vector<8x128xf32>
    %53 = math.exp %42 : vector<8x128xf32>
    %cst_24 = arith.constant 1.000000e+00 : f32
    %54 = vector.broadcast %cst_24 : f32 to vector<8x128xf32>
    %55 = arith.subf %53, %54 : vector<8x128xf32>
    %56 = arith.select %44, %52, %55 : vector<8x128xi1>, vector<8x128xf32>
    %cst_25 = arith.constant 0.000000e+00 : f32
    %57 = vector.broadcast %cst_25 : f32 to vector<8x128xf32>
    %58 = arith.cmpf ogt, %40, %57 : vector<8x128xf32>
    %59 = arith.select %58, %40, %56 : vector<8x128xi1>, vector<8x128xf32>
    %60 = vector.extract_strided_slice %59 {offsets = [0, 0], sizes = [8, 16], strides = [1, 1]} : vector<8x128xf32> to vector<8x16xf32>
    %61 = vector.extract_strided_slice %59 {offsets = [0, 16], sizes = [8, 16], strides = [1, 1]} : vector<8x128xf32> to vector<8x16xf32>
    %62 = arith.addf %60, %61 : vector<8x16xf32>
    %63 = vector.extract_strided_slice %59 {offsets = [0, 32], sizes = [8, 16], strides = [1, 1]} : vector<8x128xf32> to vector<8x16xf32>
    %64 = arith.addf %62, %63 : vector<8x16xf32>
    %65 = vector.extract_strided_slice %59 {offsets = [0, 48], sizes = [8, 16], strides = [1, 1]} : vector<8x128xf32> to vector<8x16xf32>
    %66 = arith.addf %64, %65 : vector<8x16xf32>
    %67 = vector.extract_strided_slice %59 {offsets = [0, 64], sizes = [8, 16], strides = [1, 1]} : vector<8x128xf32> to vector<8x16xf32>
    %68 = arith.addf %66, %67 : vector<8x16xf32>
    %69 = vector.extract_strided_slice %59 {offsets = [0, 80], sizes = [8, 16], strides = [1, 1]} : vector<8x128xf32> to vector<8x16xf32>
    %70 = arith.addf %68, %69 : vector<8x16xf32>
    %71 = vector.extract_strided_slice %59 {offsets = [0, 96], sizes = [8, 16], strides = [1, 1]} : vector<8x128xf32> to vector<8x16xf32>
    %72 = arith.addf %70, %71 : vector<8x16xf32>
    %73 = vector.extract_strided_slice %59 {offsets = [0, 112], sizes = [8, 16], strides = [1, 1]} : vector<8x128xf32> to vector<8x16xf32>
    %74 = arith.addf %72, %73 : vector<8x16xf32>
    %cst_26 = arith.constant 1.250000e-01 : f32
    %75 = vector.broadcast %cst_26 : f32 to vector<8x16xf32>
    %76 = arith.mulf %75, %74 : vector<8x16xf32>
    %c0_27 = arith.constant 0 : index
    %c0_28 = arith.constant 0 : index
    %c0_29 = arith.constant 0 : index
    %77 = vector.load %arg6[%c0_27, %c0_28, %c0_29] : memref<1x8x16xf32, #tpu.memory_space<vmem>>, vector<1x8x16xf32>
    %78 = vector.shape_cast %77 : vector<1x8x16xf32> to vector<8x16xf32>
    %79 = vector.shape_cast %76 : vector<8x16xf32> to vector<1x8x16xf32>
    tpu.vector_store %arg6[%c0_27, %c0_28, %c0_29], %79 {strides = array<i32>} : memref<1x8x16xf32, #tpu.memory_space<vmem>>, vector<1x8x16xf32>,
    return
  }
  func.func @transform_0(%arg0: i32) -> (i32, i32, i32) {
    %c0_i32 = arith.constant 0 : i32
    %c0_i32_0 = arith.constant 0 : i32
    %c0_i32_1 = arith.constant 0 : i32
    return %arg0, %c0_i32, %c0_i32_0 : i32, i32, i32
  }
  func.func @transform_1(%arg0: i32) -> (i32, i32) {
    %c0_i32 = arith.constant 0 : i32
    %c0_i32_0 = arith.constant 0 : i32
    %c0_i32_1 = arith.constant 0 : i32
    return %c0_i32, %c0_i32_0 : i32, i32
  }
  func.func @transform_2(%arg0: i32) -> (i32, i32) {
    %c0_i32 = arith.constant 0 : i32
    %c0_i32_0 = arith.constant 0 : i32
    %c0_i32_1 = arith.constant 0 : i32
    return %c0_i32, %c0_i32_0 : i32, i32
  }
  func.func @transform_3(%arg0: i32) -> (i32, i32) {
    %c0_i32 = arith.constant 0 : i32
    %c0_i32_0 = arith.constant 0 : i32
    %c0_i32_1 = arith.constant 0 : i32
    return %c0_i32, %c0_i32_0 : i32, i32
  }
  func.func @transform_4(%arg0: i32) -> (i32, i32) {
    %c0_i32 = arith.constant 0 : i32
    %c0_i32_0 = arith.constant 0 : i32
    %c0_i32_1 = arith.constant 0 : i32
    return %c0_i32, %c0_i32_0 : i32, i32
  }
  func.func @transform_5(%arg0: i32) -> (i32, i32, i32) {
    %c0_i32 = arith.constant 0 : i32
    %c0_i32_0 = arith.constant 0 : i32
    %c0_i32_1 = arith.constant 0 : i32
    return %arg0, %c0_i32, %c0_i32_0 : i32, i32, i32
  }
}

</mosaic_0001>

<llo_original>
// kernel: tpu_custom_call.1
$region0: #{tpu_custom_call.1}
  #allocation0 [shape = 'u32[]', space=smem, size = 0x4, offset = 0x4, fixed_abs, tag = 'smem constant byte address 0x4 - core index']
  #allocation1 [shape = 'u32[144,128]{1,0:T(1,128)}', space=vmem, size = 0x12000, scoped, tag = 'internal scratch']
  %s0 = inlined_call_operand.hbm [shape: bf16[1,32,512], index: 0, kind: input, shape index: {}]
  %s1 = inlined_call_operand.vmem [shape: bf16[8,32], index: 1, kind: input, shape index: {}]
  %s2 = inlined_call_operand.vmem [shape: f32[8,1], index: 2, kind: input, shape index: {}]
  %s3 = inlined_call_operand.vmem [shape: bf16[8,8], index: 3, kind: input, shape index: {}]
  %s4 = inlined_call_operand.vmem [shape: f32[8,1], index: 4, kind: input, shape index: {}]
  %s5 = inlined_call_operand.hbm [shape: f32[1,8,16], index: 5, kind: output, shape index: {}]
  %s6 = sld [smem:[#allocation0]]
  $region34: #{tpu_custom_call.1} parent=0
    _
  %s8 = ssub.s32 1, %s6
  %s9 = scalar_select 0, %s8, %s6
  $region1: #{tpu_custom_call.1} parent=0
    #allocation2 [shape = 'u8[32768]{0}', space=vmem, size = 0x8000, scoped, tag = 'input window, operand 0, single buffered']
    #allocation3 [shape = 's32[1]{0}', space=sflag, size = 0x4, scoped, tag = 'scoped memory for tpu_custom_call.1']
    #allocation4 [shape = 's32[1]{0}', space=sflag, size = 0x4, scoped, tag = 'scoped memory for tpu_custom_call.1']
    #allocation5 [shape = 'u8[4096]{0}', space=vmem, size = 0x1000, scoped, tag = 'output window, operand 0, single buffered']
    %10 = vsyncpa [#allocation3], 0
    %11 = vsyncpa [#allocation4], 0
    // Predicated region
    $region2: #{tpu_custom_call.1} parent=1 // pred_check
      _
    $region3: #{tpu_custom_call.1} parent=1 // pred_check_branch
      %13 = sbr.rel (0) target = $region5
    $region4: #{tpu_custom_call.1} parent=1 // pred_region
      %s15 = ssub.s32 1024, 1024
      %16 = vsyncadd [#allocation3], %s15
      %s17 = sshll.u32 [#allocation2], 4
      %s18 = int_to_ptr.vmem [resolvable:$true] %s17
      %23 = dma.hbm_to_vmem [thread:$0]  %s0, 1024, %s18, [#allocation3], 256, 256, 16
    $region5: #{tpu_custom_call.1} parent=1 // pred_fallthru
      _
    // Predicated region
    $region6: #{tpu_custom_call.1} parent=1 // pred_check
      _
    $region7: #{tpu_custom_call.1} parent=1 // pred_check_branch
      %25 = sbr.rel (0) target = $region9
    $region8: #{tpu_custom_call.1} parent=1 // pred_region
      _
    $region9: #{tpu_custom_call.1} parent=1 // pred_fallthru
      _
    // Predicated region
    $region10: #{tpu_custom_call.1} parent=1 // pred_check
      _
    $region11: #{tpu_custom_call.1} parent=1 // pred_check_branch
      %27 = sbr.rel (0) target = $region13
    $region12: #{tpu_custom_call.1} parent=1 // pred_region
      _
    $region13: #{tpu_custom_call.1} parent=1 // pred_fallthru
      _
    // Predicated region
    $region14: #{tpu_custom_call.1} parent=1 // pred_check
      _
    $region15: #{tpu_custom_call.1} parent=1 // pred_check_branch
      %29 = sbr.rel (0) target = $region17
    $region16: #{tpu_custom_call.1} parent=1 // pred_region
      _
    $region17: #{tpu_custom_call.1} parent=1 // pred_fallthru
      _
    // Predicated region
    $region18: #{tpu_custom_call.1} parent=1 // pred_check
      _
    $region19: #{tpu_custom_call.1} parent=1 // pred_check_branch
      %31 = sbr.rel (0) target = $region21
    $region20: #{tpu_custom_call.1} parent=1 // pred_region
      _
    $region21: #{tpu_custom_call.1} parent=1 // pred_fallthru
      _
    // Predicated region
    $region22: #{tpu_custom_call.1} parent=1 // pred_check
      _
    $region23: #{tpu_custom_call.1} parent=1 // pred_check_branch
      %33 = sbr.rel (0) target = $region25
    $region24: #{tpu_custom_call.1} parent=1 // pred_region
      %34 = dma.done [#allocation3], 1024
    $region25: #{tpu_custom_call.1} parent=1 // pred_fallthru
      _
    %v36 = vld [vmem:[%s1] sm:$0xf]
    %v37 = vld [vmem:[#allocation2] sm:$0xff]
    %v38 = vld [vmem:[#allocation2 + $0x8] sm:$0xff]
    %v39 = vld [vmem:[#allocation2 + $0x10] sm:$0xff]
    %v40 = vld [vmem:[#allocation2 + $0x18] sm:$0xff]
    %v41 = vld [vmem:[#allocation2 + $0x20] sm:$0xff]
    %v42 = vld [vmem:[#allocation2 + $0x28] sm:$0xff]
    %v43 = vld [vmem:[#allocation2 + $0x30] sm:$0xff]
    %v44 = vld [vmem:[#allocation2 + $0x38] sm:$0xff]
    %v45 = vld [vmem:[%s2] sm:$0xff]
    %47 = vset.pattern.permute.xlu0 0
    %48 = vperm.xlu0 %47, %v45
    %v49 = vpop.permute.xlu0 %48
    %v59 = vunpack.c.l.b16 %v37
    %v60 = vunpack.c.h.b16 %v37
    %v61 = vunpack.c.l.b16 %v38
    %v62 = vunpack.c.h.b16 %v38
    %v63 = vunpack.c.l.b16 %v39
    %v64 = vunpack.c.h.b16 %v39
    %v65 = vunpack.c.l.b16 %v40
    %v66 = vunpack.c.h.b16 %v40
    %v67 = vunpack.c.l.b16 %v41
    %v68 = vunpack.c.h.b16 %v41
    %v69 = vunpack.c.l.b16 %v42
    %v70 = vunpack.c.h.b16 %v42
    %v71 = vunpack.c.l.b16 %v43
    %v72 = vunpack.c.h.b16 %v43
    %v73 = vunpack.c.l.b16 %v44
    %v74 = vunpack.c.h.b16 %v44
    %v75 = vpack.c.b16 %v63, %v59
    %v76 = vpack.c.b16 %v64, %v60
    %v77 = vpack.c.b16 %v65, %v61
    %v78 = vpack.c.b16 %v66, %v62
    %v79 = vpack.c.b16 %v71, %v67
    %v80 = vpack.c.b16 %v72, %v68
    %v81 = vpack.c.b16 %v73, %v69
    %v82 = vpack.c.b16 %v74, %v70
    %vm91 = vcmask 261120
    %v93 = vsel %vm91, %v36, 0
    %95 = vmatprep.subr.bf16.mxu0 %v76
    %96 = vmatpush1.bf16.msra.mxu0 %v75
    %97 = vmatprep.subr.bf16.mxu0 %v80
    %98 = vmatpush1.bf16.msra.mxu0 %v79
    %99 = vmatprep.subr.bf16.mxu0 0
    %100 = vmatpush1.bf16.msra.mxu0 0
    %101 = vmatprep.subr.bf16.mxu0 0
    %102 = vmatpush1.bf16.msra.mxu0 0
    %103 = vmatprep.subr.bf16.mxu0 0
    %104 = vmatpush1.bf16.msra.mxu0 0
    %105 = vmatprep.subr.bf16.mxu0 0
    %106 = vmatpush1.bf16.msra.mxu0 0
    %107 = vmatprep.subr.bf16.mxu0 0
    %108 = vmatpush1.bf16.msra.mxu0 0
    %109 = vmatprep.subr.bf16.mxu0 0
    %110 = vmatpush1.bf16.msra.mxu0 0
    %111 = vmatprep.subr.bf16.mxu0 0
    %112 = vmatpush1.bf16.msra.mxu0 0
    %113 = vmatprep.subr.bf16.mxu0 0
    %114 = vmatpush1.bf16.msra.mxu0 0
    %115 = vmatprep.subr.bf16.mxu0 0
    %116 = vmatpush1.bf16.msra.mxu0 0
    %117 = vmatprep.subr.bf16.mxu0 0
    %118 = vmatpush1.bf16.msra.mxu0 0
    %119 = vmatprep.subr.bf16.mxu0 0
    %120 = vmatpush1.bf16.msra.mxu0 0
    %121 = vmatprep.subr.bf16.mxu0 0
    %122 = vmatpush1.bf16.msra.mxu0 0
    %123 = vmatprep.subr.bf16.mxu0 0
    %124 = vmatpush1.bf16.msra.mxu0 0
    %125 = vmatprep.subr.bf16.mxu0 0
    %126 = vmatpush1.bf16.msra.mxu0 0
    %127 = vmatprep.mubr.bf16.mxu0 0
    %128 = vmatmul.mubr.bf16.gmra.mrb[0].mxu0 %v93
    %v129 = vpop.f32.mrb[0].mxu0
    %v130 = vadd.f32 %v49, %v129
    %v131 = vpop.f32.mrb[0].mxu0
    %v132 = vadd.f32 %v49, %v131
    %v133 = vpop.f32.mrb[0].mxu0
    %v134 = vpop.f32.mrb[0].mxu0
    %135 = vdwg.mxu0
    %136 = vmatprep.subr.bf16.mxu0 %v78
    %137 = vmatpush1.bf16.msra.mxu0 %v77
    %138 = vmatprep.subr.bf16.mxu0 %v82
    %139 = vmatpush1.bf16.msra.mxu0 %v81
    %140 = vmatprep.subr.bf16.mxu0 0
    %141 = vmatpush1.bf16.msra.mxu0 0
    %142 = vmatprep.subr.bf16.mxu0 0
    %143 = vmatpush1.bf16.msra.mxu0 0
    %144 = vmatprep.subr.bf16.mxu0 0
    %145 = vmatpush1.bf16.msra.mxu0 0
    %146 = vmatprep.subr.bf16.mxu0 0
    %147 = vmatpush1.bf16.msra.mxu0 0
    %148 = vmatprep.subr.bf16.mxu0 0
    %149 = vmatpush1.bf16.msra.mxu0 0
    %150 = vmatprep.subr.bf16.mxu0 0
    %151 = vmatpush1.bf16.msra.mxu0 0
    %152 = vmatprep.subr.bf16.mxu0 0
    %153 = vmatpush1.bf16.msra.mxu0 0
    %154 = vmatprep.subr.bf16.mxu0 0
    %155 = vmatpush1.bf16.msra.mxu0 0
    %156 = vmatprep.subr.bf16.mxu0 0
    %157 = vmatpush1.bf16.msra.mxu0 0
    %158 = vmatprep.subr.bf16.mxu0 0
    %159 = vmatpush1.bf16.msra.mxu0 0
    %160 = vmatprep.subr.bf16.mxu0 0
    %161 = vmatpush1.bf16.msra.mxu0 0
    %162 = vmatprep.subr.bf16.mxu0 0
    %163 = vmatpush1.bf16.msra.mxu0 0
    %164 = vmatprep.subr.bf16.mxu0 0
    %165 = vmatpush1.bf16.msra.mxu0 0
    %166 = vmatprep.subr.bf16.mxu0 0
    %167 = vmatpush1.bf16.msra.mxu0 0
    %168 = vmatprep.mubr.bf16.mxu0 0
    %169 = vmatmul.mubr.bf16.gmra.mrb[0].mxu0 %v93
    %v170 = vpop.f32.mrb[0].mxu0
    %v171 = vadd.f32 %v49, %v170
    %v172 = vpop.f32.mrb[0].mxu0
    %v173 = vadd.f32 %v49, %v172
    %v174 = vpop.f32.mrb[0].mxu0
    %v175 = vpop.f32.mrb[0].mxu0
    %176 = vdwg.mxu0
    %v177 = vmin.f32 %v130, 0.0
    %v178 = vmin.f32 %v132, 0.0
    %v179 = vmin.f32 %v171, 0.0
    %v180 = vmin.f32 %v173, 0.0
    %vm181 = vcmp.gt.f32.partialorder %v177, -0.03125
    %vm182 = vcmp.gt.f32.partialorder %v178, -0.03125
    %vm183 = vcmp.gt.f32.partialorder %v179, -0.03125
    %vm184 = vcmp.gt.f32.partialorder %v180, -0.03125
    %v185 = vmul.f32 %v177, 0.16666667
    %v186 = vmul.f32 %v178, 0.16666667
    %v187 = vmul.f32 %v179, 0.16666667
    %v188 = vmul.f32 %v180, 0.16666667
    %v189 = vadd.f32 %v185, 0.5
    %v190 = vadd.f32 %v186, 0.5
    %v191 = vadd.f32 %v187, 0.5
    %v192 = vadd.f32 %v188, 0.5
    %v193 = vmul.f32 %v177, %v189
    %v194 = vmul.f32 %v178, %v190
    %v195 = vmul.f32 %v179, %v191
    %v196 = vmul.f32 %v180, %v192
    %v197 = vadd.f32 %v193, 1.0
    %v198 = vadd.f32 %v194, 1.0
    %v199 = vadd.f32 %v195, 1.0
    %v200 = vadd.f32 %v196, 1.0
    %v201 = vmul.f32 %v177, %v197
    %v202 = vmul.f32 %v178, %v198
    %v203 = vmul.f32 %v179, %v199
    %v204 = vmul.f32 %v180, %v200
    %v205 = vmul.f32 %v177, 1.442695
    %v206 = vpow.pop %v205
    %v207 = vmul.f32 %v178, 1.442695
    %v208 = vpow.pop %v207
    %v209 = vmul.f32 %v179, 1.442695
    %v210 = vpow.pop %v209
    %v211 = vmul.f32 %v180, 1.442695
    %v212 = vpow.pop %v211
    %v213 = vsub.f32 %v206, 1.0
    %v214 = vsub.f32 %v208, 1.0
    %v215 = vsub.f32 %v210, 1.0
    %v216 = vsub.f32 %v212, 1.0
    %v217 = vsel %vm181, %v201, %v213
    %v218 = vsel %vm182, %v202, %v214
    %v219 = vsel %vm183, %v203, %v215
    %v220 = vsel %vm184, %v204, %v216
    %vm221 = vcmp.gt.f32.partialorder %v130, 0.0
    %vm222 = vcmp.gt.f32.partialorder %v132, 0.0
    %vm223 = vcmp.gt.f32.partialorder %v171, 0.0
    %vm224 = vcmp.gt.f32.partialorder %v173, 0.0
    %v225 = vsel %vm221, %v130, %v217
    %v226 = vsel %vm222, %v132, %v218
    %v227 = vsel %vm223, %v171, %v219
    %v228 = vsel %vm224, %v173, %v220
    %v229 = vadd.f32 %v225, %v226
    %v230 = vadd.f32 %v229, %v227
    %v231 = vadd.f32 %v230, %v228
    %v232 = vmul.f32 %v231, 0.25
    %v233 = vld [vmem:[%s3] sm:$0xf]
    %v234 = vpack.c.bf16 %v232, %v232
    %v235 = vld [vmem:[%s4] sm:$0xff]
    %237 = vset.pattern.permute.xlu0 0
    %238 = vperm.xlu0 %237, %v235
    %v239 = vpop.permute.xlu0 %238
    %vm241 = vcmask 64512
    %v243 = vsel %vm241, %v233, 0
    %vm245 = vcmask 1043456
    %v247 = vsel %vm245, %v234, 0
    %249 = vmatprep.subr.bf16.mxu0 0
    %250 = vmatpush1.bf16.msra.mxu0 %v247
    %251 = vmatprep.subr.bf16.mxu0 0
    %252 = vmatpush1.bf16.msra.mxu0 0
    %253 = vmatprep.subr.bf16.mxu0 0
    %254 = vmatpush1.bf16.msra.mxu0 0
    %255 = vmatprep.subr.bf16.mxu0 0
    %256 = vmatpush1.bf16.msra.mxu0 0
    %257 = vmatprep.subr.bf16.mxu0 0
    %258 = vmatpush1.bf16.msra.mxu0 0
    %259 = vmatprep.subr.bf16.mxu0 0
    %260 = vmatpush1.bf16.msra.mxu0 0
    %261 = vmatprep.subr.bf16.mxu0 0
    %262 = vmatpush1.bf16.msra.mxu0 0
    %263 = vmatprep.subr.bf16.mxu0 0
    %264 = vmatpush1.bf16.msra.mxu0 0
    %265 = vmatprep.subr.bf16.mxu0 0
    %266 = vmatpush1.bf16.msra.mxu0 0
    %267 = vmatprep.subr.bf16.mxu0 0
    %268 = vmatpush1.bf16.msra.mxu0 0
    %269 = vmatprep.subr.bf16.mxu0 0
    %270 = vmatpush1.bf16.msra.mxu0 0
    %271 = vmatprep.subr.bf16.mxu0 0
    %272 = vmatpush1.bf16.msra.mxu0 0
    %273 = vmatprep.subr.bf16.mxu0 0
    %274 = vmatpush1.bf16.msra.mxu0 0
    %275 = vmatprep.subr.bf16.mxu0 0
    %276 = vmatpush1.bf16.msra.mxu0 0
    %277 = vmatprep.subr.bf16.mxu0 0
    %278 = vmatpush1.bf16.msra.mxu0 0
    %279 = vmatprep.subr.bf16.mxu0 0
    %280 = vmatpush1.bf16.msra.mxu0 0
    %281 = vmatprep.mubr.bf16.mxu0 0
    %282 = vmatmul.mubr.bf16.gmra.mrb[0].mxu0 %v243
    %v283 = vpop.f32.mrb[0].mxu0
    %v284 = vadd.f32 %v239, %v283
    %v285 = vpop.f32.mrb[0].mxu0
    %v286 = vpop.f32.mrb[0].mxu0
    %v287 = vpop.f32.mrb[0].mxu0
    %288 = vdwg.mxu0
    %v289 = vmin.f32 %v284, 0.0
    %vm290 = vcmp.gt.f32.partialorder %v289, -0.03125
    %v291 = vmul.f32 %v289, 0.16666667
    %v292 = vadd.f32 %v291, 0.5
    %v293 = vmul.f32 %v289, %v292
    %v294 = vadd.f32 %v293, 1.0
    %v295 = vmul.f32 %v289, %v294
    %v296 = vmul.f32 %v289, 1.442695
    %v297 = vpow.pop %v296
    %v298 = vsub.f32 %v297, 1.0
    %v299 = vsel %vm290, %v295, %v298
    %vm300 = vcmp.gt.f32.partialorder %v284, 0.0
    %v301 = vsel %vm300, %v284, %v299
    %303 = vrot.lane.b32.xlu0 %v301, 112
    %v304 = vpop.permute.xlu0 %303
    %v306 = vadd.f32 %v301, %v304
    %307 = vrot.lane.b32.xlu0 %v301, 96
    %v308 = vpop.permute.xlu0 %307
    %v310 = vadd.f32 %v306, %v308
    %311 = vrot.lane.b32.xlu0 %v301, 80
    %v312 = vpop.permute.xlu0 %311
    %v314 = vadd.f32 %v310, %v312
    %315 = vrot.lane.b32.xlu0 %v301, 64
    %v316 = vpop.permute.xlu0 %315
    %v318 = vadd.f32 %v314, %v316
    %319 = vrot.lane.b32.xlu0 %v301, 48
    %v320 = vpop.permute.xlu0 %319
    %v322 = vadd.f32 %v318, %v320
    %323 = vrot.lane.b32.xlu0 %v301, 32
    %v324 = vpop.permute.xlu0 %323
    %v326 = vadd.f32 %v322, %v324
    %327 = vrot.lane.b32.xlu0 %v301, 16
    %v328 = vpop.permute.xlu0 %327
    %v330 = vadd.f32 %v326, %v328
    %v331 = vmul.f32 %v330, 0.125
    %vm332 = vcmask 130048
    %333 = vst.msk [vmem:[#allocation5] sm:$0xff] %vm332, %v331
    // Predicated region
    $region26: #{tpu_custom_call.1} parent=1 // pred_check
      _
    $region27: #{tpu_custom_call.1} parent=1 // pred_check_branch
      %335 = sbr.rel (0) target = $region29
    $region28: #{tpu_custom_call.1} parent=1 // pred_region
      %s337 = ssub.s32 128, 128
      %338 = vsyncadd [#allocation4], %s337
      %s340 = sshll.u32 [#allocation5], 4
      %s341 = int_to_ptr.vmem [resolvable:$true] %s340
      %343 = dma.vmem_to_hbm [thread:$0]  %s341, 128, %s5, [#allocation4]
    $region29: #{tpu_custom_call.1} parent=1 // pred_fallthru
      _
    // Predicated region
    $region30: #{tpu_custom_call.1} parent=1 // pred_check
      _
    $region31: #{tpu_custom_call.1} parent=1 // pred_check_branch
      %345 = sbr.rel (0) target = $region33
    $region32: #{tpu_custom_call.1} parent=1 // pred_region
      %346 = dma.done [#allocation4], 128
    $region33: #{tpu_custom_call.1} parent=1 // pred_fallthru
      _
    %347 = vsyncpa [#allocation3], 1
    %348 = vsyncpa [#allocation4], 1

</llo_original>
